<compile_context>
chip_gen: v7x
topology: tpu7x:2x2x1
jax: 0.10.0
libtpu: 0.0.40
codegen_flags: <defaults>
</compile_context>

<pallas_src>
import functools
import math

import jax
import jax.numpy as jnp
from jax import lax
from jax.experimental import pallas as pl
from jax.experimental.pallas import tpu as pltpu


def _sepconv_kernel(x_ref, dw_ref, pw_ref, o_ref, pad_ref, *,
                    K, stride, dilation, tile_h, w_out, pad, in_dtype,
                    use_scratch):
    # x_ref  : (1, H, W, Cin)   unpadded NHWC image (resident across row tiles)
    # dw_ref : (K, K, Cin)      depthwise weights, channels on lanes
    # pw_ref : (Cout, Cin)      pointwise 1x1 weights
    # o_ref  : (1, Cout, tile_h * w_out)  lane-dense output row tile
    # pad_ref: (Hp_s, Wp, Cin)  persistent VMEM scratch: zero-padded image
    #          (dummy (1,1,1) when use_scratch=False)
    t = pl.program_id(1)
    cin = x_ref.shape[-1]

    if use_scratch:
        # Build the zero-padded image in VMEM once per batch element.
        @pl.when(t == 0)
        def _init_padded():
            pad_ref[...] = jnp.zeros(pad_ref.shape, pad_ref.dtype)
            h_in = x_ref.shape[1]
            w_in = x_ref.shape[2]
            pad_ref[pad:pad + h_in, pad:pad + w_in, :] = x_ref[0]

    dwf = dw_ref[...].astype(jnp.float32)                   # (K,K,Cin), hoisted
    row0 = pl.multiple_of(t * (tile_h * stride), tile_h * stride)
    ext_h = (tile_h - 1) * stride + 1
    ext_w = (w_out - 1) * stride + 1

    def tap(h0, w0):
        # Shifted (and possibly strided) window read; no full-image temporaries.
        if use_scratch:
            if stride == 1:
                return pad_ref[pl.ds(h0, tile_h), pl.ds(w0, w_out), :]
            win = pad_ref[pl.ds(h0, ext_h), pl.ds(w0, ext_w), :]
        else:
            if stride == 1:
                return x_ref[0, pl.ds(h0, tile_h), pl.ds(w0, w_out), :]
            win = x_ref[0, pl.ds(h0, ext_h), pl.ds(w0, ext_w), :]
        return lax.slice(win, (0, 0, 0), (ext_h, ext_w, cin),
                         (stride, stride, 1))

    # Depthwise conv: static sum over K*K shifted windows, f32 accumulation.
    acc = jnp.zeros((tile_h, w_out, cin), jnp.float32)
    for kh in range(K):
        for kw in range(K):
            patch = tap(row0 + kh * dilation, kw * dilation)
            acc = acc + patch.astype(jnp.float32) * dwf[kh, kw][None, None, :]

    # Pointwise 1x1 conv on the MXU, emitted lane-dense as (Cout, tile_h*w_out).
    # TODO(synk): for tiny Cin/Cout a VPU broadcast-FMA pointwise path would
    # beat the MXU; kept on the MXU which is right for production channel counts.
    acc2d = acc.astype(in_dtype).reshape(tile_h * w_out, cin)
    y = lax.dot_general(pw_ref[...], acc2d,
                        dimension_numbers=(((1,), (1,)), ((), ())),
                        preferred_element_type=jnp.float32)  # (Cout, tile*w_out)
    o_ref[0] = y.astype(o_ref.dtype)


def separable_conv2d(x_nchw, dw_weight, pw_weight, *, stride=1, padding=0,
                     dilation=1, tile_h=None):
    """Forward of SeparableConv2d (bias=False).

    x_nchw   : (N, Cin, H, W)        -- PyTorch NCHW input
    dw_weight: (Cin, 1, K, K)        -- nn.Conv2d(groups=Cin) weight
    pw_weight: (Cout, Cin, 1, 1)     -- nn.Conv2d 1x1 weight
    returns  : (N, Cout, H_out, W_out) in NCHW
    """
    N, Cin, H, W = x_nchw.shape
    K = dw_weight.shape[-1]
    Cout = pw_weight.shape[0]
    H_out = (H + 2 * padding - dilation * (K - 1) - 1) // stride + 1
    W_out = (W + 2 * padding - dilation * (K - 1) - 1) // stride + 1

    # Row-tile size: keep tile_h * W_out lane-aligned (multiple of 128) when
    # possible; otherwise fall back to the whole image (block == full dim).
    if tile_h is None:
        step = 128 // math.gcd(W_out, 128)
        if step >= H_out:
            tile_h = H_out
        else:
            n_steps = max(1, min(H_out // step, pl.cdiv(2048, step * W_out)))
            tile_h = step * n_steps
    tile_h = max(1, min(int(tile_h), H_out))
    if tile_h < H_out and (tile_h * W_out) % 128 != 0:
        tile_h = H_out
    num_tiles = pl.cdiv(H_out, tile_h)

    Hp = H + 2 * padding
    Wp = W + 2 * padding
    # Extra zero rows so the (discarded) last partial row-tile never reads OOB.
    Hp_s = max(Hp, (num_tiles * tile_h - 1) * stride + dilation * (K - 1) + 1)

    # Fast path: no padding and row tiles cover H_out exactly -> every tap read
    # stays inside the unpadded image, so skip the VMEM scratch copy entirely
    # and mark the row-tile grid axis parallel (no carried state).
    use_scratch = (padding > 0) or (H_out % tile_h != 0)

    # Layout glue: NCHW -> NHWC (channels on lanes); weights re-laid-out.
    x = jnp.transpose(x_nchw, (0, 2, 3, 1))                               # (N,H,W,Cin)
    dw = jnp.transpose(dw_weight[:, 0, :, :], (1, 2, 0)).astype(x.dtype)  # (K,K,Cin)
    pw = pw_weight[:, :, 0, 0].astype(x.dtype)                            # (Cout,Cin)

    kernel = functools.partial(
        _sepconv_kernel, K=K, stride=stride, dilation=dilation,
        tile_h=tile_h, w_out=W_out, pad=padding, in_dtype=x.dtype,
        use_scratch=use_scratch)

    itemsize = x.dtype.itemsize
    flops = 2 * N * H_out * W_out * Cin * (K * K + Cout)
    bytes_accessed = (x.size + dw.size + pw.size + N * Cout * H_out * W_out) * itemsize

    # VMEM budget: (optional) padded scratch + double-buffered input/output
    # blocks + weights + f32 accumulator; capped against physical VMEM
    # (64 MiB on v7x, 128 MiB v5e/v6e).
    scratch_elems = (Hp_s * Wp * Cin) if use_scratch else 1
    vmem_need = (scratch_elems + 2 * (H * W * Cin)
                 + 2 * (Cout * tile_h * W_out)
                 + K * K * Cin + Cout * Cin) * itemsize
    vmem_need += tile_h * W_out * Cin * 4
    try:
        phys_vmem = pltpu.get_tpu_info().vmem_capacity_bytes
    except Exception:
        phys_vmem = 128 * 1024 * 1024
    vmem_limit = int(min(int(0.75 * phys_vmem),
                         max(32 * 1024 * 1024, 2 * vmem_need)))

    scratch_shape = (Hp_s, Wp, Cin) if use_scratch else (1, 1, 1)
    dim_sem = ("parallel", "arbitrary") if use_scratch else ("parallel", "parallel")

    out = pl.pallas_call(
        kernel,
        out_shape=jax.ShapeDtypeStruct((N, Cout, H_out * W_out), x.dtype),
        grid_spec=pltpu.PrefetchScalarGridSpec(
            num_scalar_prefetch=0,
            grid=(N, num_tiles),
            in_specs=[
                pl.BlockSpec((1, H, W, Cin), lambda n, t: (n, 0, 0, 0)),
                pl.BlockSpec((K, K, Cin), lambda n, t: (0, 0, 0)),
                pl.BlockSpec((Cout, Cin), lambda n, t: (0, 0)),
            ],
            out_specs=pl.BlockSpec((1, Cout, tile_h * W_out),
                                   lambda n, t: (n, 0, t)),
            scratch_shapes=[pltpu.VMEM(scratch_shape, x.dtype)],
        ),
        compiler_params=pltpu.CompilerParams(
            dimension_semantics=dim_sem,
            vmem_limit_bytes=vmem_limit),
        cost_estimate=pl.CostEstimate(flops=flops, transcendentals=0,
                                      bytes_accessed=bytes_accessed),
    )(x, dw, pw)

    # Lane-dense (N, Cout, H*W) -> NCHW is a free reshape (no transpose).
    return out.reshape(N, Cout, H_out, W_out)


def _reference(x, dw_weight, pw_weight, *, stride, padding, dilation):
    """Pure-JAX reference matching PyTorch Conv2d semantics."""
    Cin = x.shape[1]
    y = lax.conv_general_dilated(
        x, dw_weight, window_strides=(stride, stride),
        padding=((padding, padding), (padding, padding)),
        rhs_dilation=(dilation, dilation),
        feature_group_count=Cin,
        dimension_numbers=("NCHW", "OIHW", "NCHW"))
    y = lax.conv_general_dilated(
        y, pw_weight, window_strides=(1, 1), padding="VALID",
        dimension_numbers=("NCHW", "OIHW", "NCHW"))
    return y


if __name__ == "__main__":
    # SeparableConv2d(in_channels=4, out_channels=8, kernel_size=3, bias=False)
    N, Cin, H, W = 2, 4, 16, 16
    Cout, K = 8, 3

    key = jax.random.PRNGKey(0)
    kx, kd, kp = jax.random.split(key, 3)
    x = jax.random.normal(kx, (N, Cin, H, W), dtype=jnp.float32)
    dw_weight = jax.random.normal(kd, (Cin, 1, K, K), dtype=jnp.float32) * 0.1
    pw_weight = jax.random.normal(kp, (Cout, Cin, 1, 1), dtype=jnp.float32) * 0.1

    configs = [
        dict(stride=1, padding=1, dilation=1, tile_h=8),     # multi row-tile + pad (scratch path)
        dict(stride=2, padding=0, dilation=1, tile_h=None),  # strided, no padding (fast path)
        dict(stride=1, padding=0, dilation=1, tile_h=7),     # no padding, multi-tile fast path
        dict(stride=1, padding=2, dilation=2, tile_h=8),     # dilated
    ]
    for cfg in configs:
        out = separable_conv2d(x, dw_weight, pw_weight, stride=cfg["stride"],
                               padding=cfg["padding"], dilation=cfg["dilation"],
                               tile_h=cfg["tile_h"])
        out = jax.block_until_ready(out)
        ref = _reference(x, dw_weight, pw_weight, stride=cfg["stride"],
                         padding=cfg["padding"], dilation=cfg["dilation"])
        assert out.shape == ref.shape, (out.shape, ref.shape)
        assert jnp.allclose(out, ref, atol=1e-4, rtol=1e-4), f"mismatch vs reference: {cfg}"

    print("KERNEL_OK")
</pallas_src>

<mosaic_0001>
module attributes {stable_mosaic.version = 11 : i64} {
  func.func @_sepconv_kernel(%arg0: i32, %arg1: i32, %arg2: memref<1x16x16x4xf32, #tpu.memory_space<vmem>>, %arg3: memref<3x3x4xf32, #tpu.memory_space<vmem>>, %arg4: memref<8x4xf32, #tpu.memory_space<vmem>>, %arg5: memref<1x8x128xf32, #tpu.memory_space<vmem>>, %arg6: memref<18x18x4xf32, #tpu.memory_space<vmem>>) attributes {dimension_semantics = [#tpu.dimension_semantics<parallel>, #tpu.dimension_semantics<arbitrary>], iteration_bounds = array<i64: 2, 2>, scalar_prefetch = 0 : i64, scratch_operands = 1 : i64, tpu.core_type = #tpu.core_type<tc>, window_params = [{transform_indices = @transform_0, window_bounds = array<i64: 1, 16, 16, 4>}, {pipeline_mode = #tpu.pipeline_mode<synchronous>, transform_indices = @transform_1, window_bounds = array<i64: 3, 3, 4>}, {pipeline_mode = #tpu.pipeline_mode<synchronous>, transform_indices = @transform_2, window_bounds = array<i64: 8, 4>}, {transform_indices = @transform_3, window_bounds = array<i64: 1, 8, 128>}]} {
    %c0_i32 = arith.constant 0 : i32
    %0 = arith.cmpi eq, %arg1, %c0_i32 : i32
    %1 = arith.extui %0 : i1 to i32
    %c0_i32_0 = arith.constant 0 : i32
    %2 = arith.cmpi ne, %1, %c0_i32_0 : i32
    scf.if %2 {
      %cst_32 = arith.constant 0.000000e+00 : f32
      %94 = vector.broadcast %cst_32 : f32 to vector<18x18x4xf32>
      %c0_33 = arith.constant 0 : index
      %c0_34 = arith.constant 0 : index
      %c0_35 = arith.constant 0 : index
      %95 = vector.load %arg6[%c0_33, %c0_34, %c0_35] : memref<18x18x4xf32, #tpu.memory_space<vmem>>, vector<18x18x4xf32>
      tpu.vector_store %arg6[%c0_33, %c0_34, %c0_35], %94 {strides = array<i32>} : memref<18x18x4xf32, #tpu.memory_space<vmem>>, vector<18x18x4xf32>,
      %c0_36 = arith.constant 0 : index
      %c0_37 = arith.constant 0 : index
      %c0_38 = arith.constant 0 : index
      %c0_39 = arith.constant 0 : index
      %96 = vector.load %arg2[%c0_36, %c0_37, %c0_38, %c0_39] : memref<1x16x16x4xf32, #tpu.memory_space<vmem>>, vector<1x16x16x4xf32>
      %97 = vector.shape_cast %96 : vector<1x16x16x4xf32> to vector<16x16x4xf32>
      %c1_40 = arith.constant 1 : index
      %c1_41 = arith.constant 1 : index
      %c0_42 = arith.constant 0 : index
      %98 = vector.load %arg6[%c1_40, %c1_41, %c0_42] : memref<18x18x4xf32, #tpu.memory_space<vmem>>, vector<16x16x4xf32>
      tpu.vector_store %arg6[%c1_40, %c1_41, %c0_42], %97 {strides = array<i32>} : memref<18x18x4xf32, #tpu.memory_space<vmem>>, vector<16x16x4xf32>,
    } else {
    }
    %c0 = arith.constant 0 : index
    %c0_1 = arith.constant 0 : index
    %c0_2 = arith.constant 0 : index
    %3 = vector.load %arg3[%c0, %c0_1, %c0_2] : memref<3x3x4xf32, #tpu.memory_space<vmem>>, vector<3x3x4xf32>
    %c8_i32 = arith.constant 8 : i32
    %4 = arith.muli %arg1, %c8_i32 : i32
    %5 = tpu.assume_multiple %4, 8 : i32
    %cst = arith.constant 0.000000e+00 : f32
    %6 = vector.broadcast %cst : f32 to vector<8x16x4xf32>
    %c0_i32_3 = arith.constant 0 : i32
    %7 = arith.addi %5, %c0_i32_3 : i32
    %8 = arith.index_cast %7 : i32 to index
    %c0_4 = arith.constant 0 : index
    %c0_5 = arith.constant 0 : index
    %9 = vector.load %arg6[%8, %c0_4, %c0_5] : memref<18x18x4xf32, #tpu.memory_space<vmem>>, vector<8x16x4xf32>
    %10 = vector.extract_strided_slice %3 {offsets = [0, 0, 0], sizes = [1, 1, 4], strides = [1, 1, 1]} : vector<3x3x4xf32> to vector<1x1x4xf32>
    %11 = vector.shape_cast %10 : vector<1x1x4xf32> to vector<4xf32>
    %12 = vector.shape_cast %11 : vector<4xf32> to vector<1x1x4xf32>
    %13 = vector.broadcast %12 : vector<1x1x4xf32> to vector<8x16x4xf32>
    %14 = arith.mulf %9, %13 : vector<8x16x4xf32>
    %15 = arith.addf %6, %14 : vector<8x16x4xf32>
    %c0_i32_6 = arith.constant 0 : i32
    %16 = arith.addi %5, %c0_i32_6 : i32
    %17 = arith.index_cast %16 : i32 to index
    %c1 = arith.constant 1 : index
    %c0_7 = arith.constant 0 : index
    %18 = vector.load %arg6[%17, %c1, %c0_7] : memref<18x18x4xf32, #tpu.memory_space<vmem>>, vector<8x16x4xf32>
    %19 = vector.extract_strided_slice %3 {offsets = [0, 1, 0], sizes = [1, 1, 4], strides = [1, 1, 1]} : vector<3x3x4xf32> to vector<1x1x4xf32>
    %20 = vector.shape_cast %19 : vector<1x1x4xf32> to vector<4xf32>
    %21 = vector.shape_cast %20 : vector<4xf32> to vector<1x1x4xf32>
    %22 = vector.broadcast %21 : vector<1x1x4xf32> to vector<8x16x4xf32>
    %23 = arith.mulf %18, %22 : vector<8x16x4xf32>
    %24 = arith.addf %15, %23 : vector<8x16x4xf32>
    %c0_i32_8 = arith.constant 0 : i32
    %25 = arith.addi %5, %c0_i32_8 : i32
    %26 = arith.index_cast %25 : i32 to index
    %c2 = arith.constant 2 : index
    %c0_9 = arith.constant 0 : index
    %27 = vector.load %arg6[%26, %c2, %c0_9] : memref<18x18x4xf32, #tpu.memory_space<vmem>>, vector<8x16x4xf32>
    %28 = vector.extract_strided_slice %3 {offsets = [0, 2, 0], sizes = [1, 1, 4], strides = [1, 1, 1]} : vector<3x3x4xf32> to vector<1x1x4xf32>
    %29 = vector.shape_cast %28 : vector<1x1x4xf32> to vector<4xf32>
    %30 = vector.shape_cast %29 : vector<4xf32> to vector<1x1x4xf32>
    %31 = vector.broadcast %30 : vector<1x1x4xf32> to vector<8x16x4xf32>
    %32 = arith.mulf %27, %31 : vector<8x16x4xf32>
    %33 = arith.addf %24, %32 : vector<8x16x4xf32>
    %c1_i32 = arith.constant 1 : i32
    %34 = arith.addi %5, %c1_i32 : i32
    %35 = arith.index_cast %34 : i32 to index
    %c0_10 = arith.constant 0 : index
    %c0_11 = arith.constant 0 : index
    %36 = vector.load %arg6[%35, %c0_10, %c0_11] : memref<18x18x4xf32, #tpu.memory_space<vmem>>, vector<8x16x4xf32>
    %37 = vector.extract_strided_slice %3 {offsets = [1, 0, 0], sizes = [1, 1, 4], strides = [1, 1, 1]} : vector<3x3x4xf32> to vector<1x1x4xf32>
    %38 = vector.shape_cast %37 : vector<1x1x4xf32> to vector<4xf32>
    %39 = vector.shape_cast %38 : vector<4xf32> to vector<1x1x4xf32>
    %40 = vector.broadcast %39 : vector<1x1x4xf32> to vector<8x16x4xf32>
    %41 = arith.mulf %36, %40 : vector<8x16x4xf32>
    %42 = arith.addf %33, %41 : vector<8x16x4xf32>
    %c1_i32_12 = arith.constant 1 : i32
    %43 = arith.addi %5, %c1_i32_12 : i32
    %44 = arith.index_cast %43 : i32 to index
    %c1_13 = arith.constant 1 : index
    %c0_14 = arith.constant 0 : index
    %45 = vector.load %arg6[%44, %c1_13, %c0_14] : memref<18x18x4xf32, #tpu.memory_space<vmem>>, vector<8x16x4xf32>
    %46 = vector.extract_strided_slice %3 {offsets = [1, 1, 0], sizes = [1, 1, 4], strides = [1, 1, 1]} : vector<3x3x4xf32> to vector<1x1x4xf32>
    %47 = vector.shape_cast %46 : vector<1x1x4xf32> to vector<4xf32>
    %48 = vector.shape_cast %47 : vector<4xf32> to vector<1x1x4xf32>
    %49 = vector.broadcast %48 : vector<1x1x4xf32> to vector<8x16x4xf32>
    %50 = arith.mulf %45, %49 : vector<8x16x4xf32>
    %51 = arith.addf %42, %50 : vector<8x16x4xf32>
    %c1_i32_15 = arith.constant 1 : i32
    %52 = arith.addi %5, %c1_i32_15 : i32
    %53 = arith.index_cast %52 : i32 to index
    %c2_16 = arith.constant 2 : index
    %c0_17 = arith.constant 0 : index
    %54 = vector.load %arg6[%53, %c2_16, %c0_17] : memref<18x18x4xf32, #tpu.memory_space<vmem>>, vector<8x16x4xf32>
    %55 = vector.extract_strided_slice %3 {offsets = [1, 2, 0], sizes = [1, 1, 4], strides = [1, 1, 1]} : vector<3x3x4xf32> to vector<1x1x4xf32>
    %56 = vector.shape_cast %55 : vector<1x1x4xf32> to vector<4xf32>
    %57 = vector.shape_cast %56 : vector<4xf32> to vector<1x1x4xf32>
    %58 = vector.broadcast %57 : vector<1x1x4xf32> to vector<8x16x4xf32>
    %59 = arith.mulf %54, %58 : vector<8x16x4xf32>
    %60 = arith.addf %51, %59 : vector<8x16x4xf32>
    %c2_i32 = arith.constant 2 : i32
    %61 = arith.addi %5, %c2_i32 : i32
    %62 = arith.index_cast %61 : i32 to index
    %c0_18 = arith.constant 0 : index
    %c0_19 = arith.constant 0 : index
    %63 = vector.load %arg6[%62, %c0_18, %c0_19] : memref<18x18x4xf32, #tpu.memory_space<vmem>>, vector<8x16x4xf32>
    %64 = vector.extract_strided_slice %3 {offsets = [2, 0, 0], sizes = [1, 1, 4], strides = [1, 1, 1]} : vector<3x3x4xf32> to vector<1x1x4xf32>
    %65 = vector.shape_cast %64 : vector<1x1x4xf32> to vector<4xf32>
    %66 = vector.shape_cast %65 : vector<4xf32> to vector<1x1x4xf32>
    %67 = vector.broadcast %66 : vector<1x1x4xf32> to vector<8x16x4xf32>
    %68 = arith.mulf %63, %67 : vector<8x16x4xf32>
    %69 = arith.addf %60, %68 : vector<8x16x4xf32>
    %c2_i32_20 = arith.constant 2 : i32
    %70 = arith.addi %5, %c2_i32_20 : i32
    %71 = arith.index_cast %70 : i32 to index
    %c1_21 = arith.constant 1 : index
    %c0_22 = arith.constant 0 : index
    %72 = vector.load %arg6[%71, %c1_21, %c0_22] : memref<18x18x4xf32, #tpu.memory_space<vmem>>, vector<8x16x4xf32>
    %73 = vector.extract_strided_slice %3 {offsets = [2, 1, 0], sizes = [1, 1, 4], strides = [1, 1, 1]} : vector<3x3x4xf32> to vector<1x1x4xf32>
    %74 = vector.shape_cast %73 : vector<1x1x4xf32> to vector<4xf32>
    %75 = vector.shape_cast %74 : vector<4xf32> to vector<1x1x4xf32>
    %76 = vector.broadcast %75 : vector<1x1x4xf32> to vector<8x16x4xf32>
    %77 = arith.mulf %72, %76 : vector<8x16x4xf32>
    %78 = arith.addf %69, %77 : vector<8x16x4xf32>
    %c2_i32_23 = arith.constant 2 : i32
    %79 = arith.addi %5, %c2_i32_23 : i32
    %80 = arith.index_cast %79 : i32 to index
    %c2_24 = arith.constant 2 : index
    %c0_25 = arith.constant 0 : index
    %81 = vector.load %arg6[%80, %c2_24, %c0_25] : memref<18x18x4xf32, #tpu.memory_space<vmem>>, vector<8x16x4xf32>
    %82 = vector.extract_strided_slice %3 {offsets = [2, 2, 0], sizes = [1, 1, 4], strides = [1, 1, 1]} : vector<3x3x4xf32> to vector<1x1x4xf32>
    %83 = vector.shape_cast %82 : vector<1x1x4xf32> to vector<4xf32>
    %84 = vector.shape_cast %83 : vector<4xf32> to vector<1x1x4xf32>
    %85 = vector.broadcast %84 : vector<1x1x4xf32> to vector<8x16x4xf32>
    %86 = arith.mulf %81, %85 : vector<8x16x4xf32>
    %87 = arith.addf %78, %86 : vector<8x16x4xf32>
    %88 = vector.shape_cast %87 : vector<8x16x4xf32> to vector<128x4xf32>
    %c0_26 = arith.constant 0 : index
    %c0_27 = arith.constant 0 : index
    %89 = vector.load %arg4[%c0_26, %c0_27] : memref<8x4xf32, #tpu.memory_space<vmem>>, vector<8x4xf32>
    %cst_28 = arith.constant dense<0.000000e+00> : vector<8x128xf32>
    %90 = tpu.matmul %89, %88, %cst_28 {dimension_numbers = #tpu.dot_dimension_numbers<[1], [1], [0], [0], [0, 0, 1, 0], [], []>} : vector<8x4xf32>, vector<128x4xf32>, vector<8x128xf32> -> vector<8x128xf32>
    %c0_29 = arith.constant 0 : index
    %c0_30 = arith.constant 0 : index
    %c0_31 = arith.constant 0 : index
    %91 = vector.load %arg5[%c0_29, %c0_30, %c0_31] : memref<1x8x128xf32, #tpu.memory_space<vmem>>, vector<1x8x128xf32>
    %92 = vector.shape_cast %91 : vector<1x8x128xf32> to vector<8x128xf32>
    %93 = vector.shape_cast %90 : vector<8x128xf32> to vector<1x8x128xf32>
    tpu.vector_store %arg5[%c0_29, %c0_30, %c0_31], %93 {strides = array<i32>} : memref<1x8x128xf32, #tpu.memory_space<vmem>>, vector<1x8x128xf32>,
    return
  }
  func.func @transform_0(%arg0: i32, %arg1: i32) -> (i32, i32, i32, i32) {
    %c0_i32 = arith.constant 0 : i32
    %c0_i32_0 = arith.constant 0 : i32
    %c0_i32_1 = arith.constant 0 : i32
    %c0_i32_2 = arith.constant 0 : i32
    return %arg0, %c0_i32, %c0_i32_0, %c0_i32_1 : i32, i32, i32, i32
  }
  func.func @transform_1(%arg0: i32, %arg1: i32) -> (i32, i32, i32) {
    %c0_i32 = arith.constant 0 : i32
    %c0_i32_0 = arith.constant 0 : i32
    %c0_i32_1 = arith.constant 0 : i32
    %c0_i32_2 = arith.constant 0 : i32
    return %c0_i32, %c0_i32_0, %c0_i32_1 : i32, i32, i32
  }
  func.func @transform_2(%arg0: i32, %arg1: i32) -> (i32, i32) {
    %c0_i32 = arith.constant 0 : i32
    %c0_i32_0 = arith.constant 0 : i32
    %c0_i32_1 = arith.constant 0 : i32
    return %c0_i32, %c0_i32_0 : i32, i32
  }
  func.func @transform_3(%arg0: i32, %arg1: i32) -> (i32, i32, i32) {
    %c0_i32 = arith.constant 0 : i32
    %c0_i32_0 = arith.constant 0 : i32
    return %arg0, %c0_i32, %arg1 : i32, i32, i32
  }
}

</mosaic_0001>

<llo_original>
// kernel: tpu_custom_call.1
$region0: #{tpu_custom_call.1}
  #allocation0 [shape = 'u32[]', space=smem, size = 0x4, offset = 0x4, fixed_abs, tag = 'smem constant byte address 0x4 - core index']
  #allocation1 [shape = 'u32[144,128]{1,0:T(1,128)}', space=vmem, size = 0x12000, scoped, tag = 'internal scratch']
  #allocation2 [shape = 'f32[18,18,4]{2,1,0:T(8,128)}', space=vmem, size = 0x36000, scoped, tag = 'scratch operand']
  %s0 = inlined_call_operand.vmem [shape: f32[2,16,16,4], index: 0, kind: input, shape index: {}]
  %s1 = inlined_call_operand.vmem [shape: f32[3,3,4], index: 1, kind: input, shape index: {}]
  %s2 = inlined_call_operand.vmem [shape: f32[8,4], index: 2, kind: input, shape index: {}]
  %s3 = inlined_call_operand.hbm [shape: f32[2,8,256], index: 3, kind: output, shape index: {}]
  %s4 = sld [smem:[#allocation0]]
  $region49: #{tpu_custom_call.1} parent=0
    _
  %s6 = ssub.s32 1, %s4
  %s7 = scalar_select 0, %s6, %s4
  $region1: #{tpu_custom_call.1} parent=0
    #allocation3 [shape = 'u8[8192]{0}', space=vmem, size = 0x2000, scoped, tag = 'output window, operand 0']
    #allocation4 [shape = 's32[2]{0}', space=sflag, size = 0x8, scoped, tag = 'scoped memory for tpu_custom_call.1']
    %8 = vsyncpa [#allocation4], 0
    %s9 = scalar_lea.sflag [#allocation4], 1
    %10 = vsyncpa %s9, 0
    loop: start=0, step=1, limit=6
    $region2: #{tpu_custom_call.1} parent=1 // loop_pre_header
      _
    $region3: #{tpu_custom_call.1} parent=1 // loop_header
      %s12 = sphi 0, %s16
      %p13 = scmp.ge.s32.totalorder %s12, 6
      %s19 = sphi 0, %s31
      %s20 = sphi 0, %s27
      %s21 = sphi 0, %s19
      %s22 = sphi 0, %s20
      %s23 = sphi 0, %s21
      %s24 = sphi 0, %s22
      %s34 = sphi 0, %s36
      %s37 = sphi 0, %s34
      %s38 = sphi 0, %s37
      %s54 = sphi 0, %s38
      %s58 = sphi 0, %s58
      %s60 = sphi 0, %s58
      %s61 = sphi 0, %s60
      %s75 = sphi 0, %s61
      %s79 = sphi 0, %s79
      %s81 = sphi 0, %s79
      %s82 = sphi 0, %s81
      %s96 = sphi 0, %s82
      %s104 = sphi 0, %s106
      %s107 = sphi 0, %s104
      %s108 = sphi 0, %s107
      %s124 = sphi 0, %s108
    $region4: #{tpu_custom_call.1} parent=1 // loop_header_branch
      %15 = sbr.rel (%p13) target = $region8
    $region5: #{tpu_custom_call.1} parent=1 // loop_body
      %s17 = ssub.s32 %s12, 1
      %s18 = ssub.s32 %s12, 2
      %s25 = sadd.s32 1, %s20
      %p26 = scmp.ge.s32.totalorder %s25, 2
      %s27 = scalar_select %p26, 0, %s25
      %s28 = sadd.s32 1, %s19
      %s29 = scalar_select %p26, %s28, %s19
      %p30 = scmp.ge.s32.totalorder %s29, 2
      %s31 = scalar_select %p30, 0, %s29
      %s32 = ssub.s32 %s19, %s31
      %p33 = scmp.eq.s32.totalorder %s32, 0
      %s35 = sadd.s32 %s34, 1
      %s36 = scalar_select %p33, %s34, %s35
      %p39 = pneg %p33
      %p40 = scmp.eq.s32.totalorder %s12, 3
      %p41 = por %p39, %p40
      %p42 = scmp.ne.s32.totalorder %s34, %s37
      %p43 = scmp.eq.s32.totalorder %s12, 0
      %p44 = por %p42, %p43
      %p45 = scmp.ne.s32.totalorder %s34, %s37
      %p46 = scmp.eq.s32.totalorder %s17, 3
      %p47 = por %p45, %p46
      %p48 = scmp.ne.s32.totalorder %s37, %s38
      %p49 = scmp.eq.s32.totalorder %s17, 0
      %p50 = por %p48, %p49
      %p51 = scmp.ne.s32.totalorder %s37, %s38
      %p52 = scmp.eq.s32.totalorder %s18, 3
      %p53 = por %p51, %p52
      %p55 = scmp.ne.s32.totalorder %s38, %s54
      %p56 = scmp.eq.s32.totalorder %s18, 0
      %p57 = por %p55, %p56
      %s59 = sadd.s32 %s58, 1
      %p62 = scmp.eq.s32.totalorder %s12, 3
      %p63 = scmp.ne.s32.totalorder %s58, %s60
      %p64 = scmp.eq.s32.totalorder %s12, 0
      %p65 = por %p63, %p64
      %p66 = scmp.ne.s32.totalorder %s58, %s60
      %p67 = scmp.eq.s32.totalorder %s17, 3
      %p68 = por %p66, %p67
      %p69 = scmp.ne.s32.totalorder %s60, %s61
      %p70 = scmp.eq.s32.totalorder %s17, 0
      %p71 = por %p69, %p70
      %p72 = scmp.ne.s32.totalorder %s60, %s61
      %p73 = scmp.eq.s32.totalorder %s18, 3
      %p74 = por %p72, %p73
      %p76 = scmp.ne.s32.totalorder %s61, %s75
      %p77 = scmp.eq.s32.totalorder %s18, 0
      %p78 = por %p76, %p77
      %s80 = sadd.s32 %s79, 1
      %p83 = scmp.eq.s32.totalorder %s12, 3
      %p84 = scmp.ne.s32.totalorder %s79, %s81
      %p85 = scmp.eq.s32.totalorder %s12, 0
      %p86 = por %p84, %p85
      %p87 = scmp.ne.s32.totalorder %s79, %s81
      %p88 = scmp.eq.s32.totalorder %s17, 3
      %p89 = por %p87, %p88
      %p90 = scmp.ne.s32.totalorder %s81, %s82
      %p91 = scmp.eq.s32.totalorder %s17, 0
      %p92 = por %p90, %p91
      %p93 = scmp.ne.s32.totalorder %s81, %s82
      %p94 = scmp.eq.s32.totalorder %s18, 3
      %p95 = por %p93, %p94
      %p97 = scmp.ne.s32.totalorder %s82, %s96
      %p98 = scmp.eq.s32.totalorder %s18, 0
      %p99 = por %p97, %p98
      %s100 = ssub.s32 %s19, %s31
      %s101 = ssub.s32 %s20, %s27
      %s102 = sor.u32 %s100, %s101
      %p103 = scmp.eq.s32.totalorder %s102, 0
      %s105 = sadd.s32 %s104, 1
      %s106 = scalar_select %p103, %s104, %s105
      %p109 = pneg %p103
      %p110 = scmp.eq.s32.totalorder %s12, 3
      %p111 = por %p109, %p110
      %p112 = scmp.ne.s32.totalorder %s104, %s107
      %p113 = scmp.eq.s32.totalorder %s12, 0
      %p114 = por %p112, %p113
      %p115 = scmp.ne.s32.totalorder %s104, %s107
      %p116 = scmp.eq.s32.totalorder %s17, 3
      %p117 = por %p115, %p116
      %p118 = scmp.ne.s32.totalorder %s107, %s108
      %p119 = scmp.eq.s32.totalorder %s17, 0
      %p120 = por %p118, %p119
      %p121 = scmp.ne.s32.totalorder %s107, %s108
      %p122 = scmp.eq.s32.totalorder %s18, 3
      %p123 = por %p121, %p122
      %p125 = scmp.ne.s32.totalorder %s108, %s124
      %p126 = scmp.eq.s32.totalorder %s18, 0
      %p127 = por %p125, %p126
      %p128 = scmp.le.s32.totalorder 1, %s12
      %p129 = scmp.lt.s32.totalorder %s12, 5
      %p130 = pnand %p128, %p129
      %p131 = pneg %p130
      // Predicated region
      $region9: #{tpu_custom_call.1} parent=5 // pred_check
        _
      $region10: #{tpu_custom_call.1} parent=5 // pred_check_branch
        %133 = sbr.rel (%p130) target = $region12
      $region11: #{tpu_custom_call.1} parent=5 // pred_region
        %s134 = ssub.s32 %s12, 1
        // Predicated region
        $region13: #{tpu_custom_call.1} parent=11 // pred_check
          %p135 = pneg %p71
        $region14: #{tpu_custom_call.1} parent=11 // pred_check_branch
          %137 = sbr.rel (%p135) target = $region16
        $region15: #{tpu_custom_call.1} parent=11 // pred_region
          _
        $region16: #{tpu_custom_call.1} parent=11 // pred_fallthru
          _
        // Predicated region
        $region17: #{tpu_custom_call.1} parent=11 // pred_check
          %p138 = pneg %p92
        $region18: #{tpu_custom_call.1} parent=11 // pred_check_branch
          %140 = sbr.rel (%p138) target = $region20
        $region19: #{tpu_custom_call.1} parent=11 // pred_region
          _
        $region20: #{tpu_custom_call.1} parent=11 // pred_fallthru
          _
      $region12: #{tpu_custom_call.1} parent=5 // pred_fallthru
        _
      %p141 = scmp.lt.s32.totalorder %s12, 4
      // Predicated region
      $region21: #{tpu_custom_call.1} parent=5 // pred_check
        %p142 = pneg %p141
      $region22: #{tpu_custom_call.1} parent=5 // pred_check_branch
        %144 = sbr.rel (%p142) target = $region24
      $region23: #{tpu_custom_call.1} parent=5 // pred_region
        // Predicated region
        $region25: #{tpu_custom_call.1} parent=23 // pred_check
          %p145 = pneg %p44
        $region26: #{tpu_custom_call.1} parent=23 // pred_check_branch
          %147 = sbr.rel (%p145) target = $region28
        $region27: #{tpu_custom_call.1} parent=23 // pred_region
          %p148 = scmp.lt.s32.totalorder %s19, 1
          %s149 = scalar_select %p148, %s19, 1
          %s150 = smul.addr %s149, 32
          %s151 = smul.addr %s150, 8
          %s152 = scalar_lea.vmem %s0, %s151
        $region28: #{tpu_custom_call.1} parent=23 // pred_fallthru
          _
      $region24: #{tpu_custom_call.1} parent=5 // pred_fallthru
        _
      %p153 = scmp.le.s32.totalorder 1, %s12
      %p154 = scmp.lt.s32.totalorder %s12, 5
      %p155 = pnand %p153, %p154
      %p156 = pneg %p155
      // Predicated region
      $region29: #{tpu_custom_call.1} parent=5 // pred_check
        _
      $region30: #{tpu_custom_call.1} parent=5 // pred_check_branch
        %158 = sbr.rel (%p155) target = $region32
      $region31: #{tpu_custom_call.1} parent=5 // pred_region
        %s159 = ssub.s32 %s12, 1
        %p160 = scmp.lt.s32.totalorder %s21, 1
        %s161 = scalar_select %p160, %s21, 1
        %s162 = smul.addr %s161, 32
        %s163 = smul.addr %s162, 8
        %s164 = scalar_lea.vmem %s0, %s163
        %p165 = pneg %p50
        %p166 = pneg %p47
        %p167 = pneg %p71
        %p168 = pneg %p68
        %p169 = pneg %p92
        %p170 = pneg %p89
        %p171 = pneg %p120
        %p172 = pneg %p117
        %s173 = sand.u32 %s107, 1
        %s174 = scalar_lea.sflag [#allocation4], %s173
        %s175 = sand.u32 %s107, 1
        %s176 = smul.addr %s175, 8
        %s177 = scalar_lea.vmem [#allocation3], %s176
        %p178 = scmp.lt.s32.totalorder %s21, 1
        %s179 = scalar_select %p178, %s21, 1
        %s180 = smul.addr %s179, 32
        %s181 = smul.addr %s180, 8
        %s182 = scalar_lea.vmem %s0, %s181
        %p183 = scmp.eq.s32.totalorder %s22, 0
        // Predicated region
        $region33: #{tpu_custom_call.1} parent=31 // pred_check
          %p184 = pneg %p183
        $region34: #{tpu_custom_call.1} parent=31 // pred_check_branch
          %186 = sbr.rel (%p184) target = $region36
        $region35: #{tpu_custom_call.1} parent=31 // pred_region
          %vm187 = vcmask 31744
          %188 = vst.msk [vmem:[#allocation2] sm:$0xff] %vm187, 0.0
          %189 = vst.msk [vmem:[#allocation2 + $0x8] sm:$0xff] %vm187, 0.0
          %vm190 = vcmask 25600
          %191 = vst.msk [vmem:[#allocation2 + $0x10] sm:$0x3] %vm190, 0.0
          %192 = vst.msk [vmem:[#allocation2 + $0x18] sm:$0xff] %vm187, 0.0
          %193 = vst.msk [vmem:[#allocation2 + $0x20] sm:$0xff] %vm187, 0.0
          %194 = vst.msk [vmem:[#allocation2 + $0x28] sm:$0x3] %vm190, 0.0
          %195 = vst.msk [vmem:[#allocation2 + $0x30] sm:$0xff] %vm187, 0.0
          %196 = vst.msk [vmem:[#allocation2 + $0x38] sm:$0xff] %vm187, 0.0
          %197 = vst.msk [vmem:[#allocation2 + $0x40] sm:$0x3] %vm190, 0.0
          %198 = vst.msk [vmem:[#allocation2 + $0x48] sm:$0xff] %vm187, 0.0
          %199 = vst.msk [vmem:[#allocation2 + $0x50] sm:$0xff] %vm187, 0.0
          %200 = vst.msk [vmem:[#allocation2 + $0x58] sm:$0x3] %vm190, 0.0
          %201 = vst.msk [vmem:[#allocation2 + $0x60] sm:$0xff] %vm187, 0.0
          %202 = vst.msk [vmem:[#allocation2 + $0x68] sm:$0xff] %vm187, 0.0
          %203 = vst.msk [vmem:[#allocation2 + $0x70] sm:$0x3] %vm190, 0.0
          %204 = vst.msk [vmem:[#allocation2 + $0x78] sm:$0xff] %vm187, 0.0
          %205 = vst.msk [vmem:[#allocation2 + $0x80] sm:$0xff] %vm187, 0.0
          %206 = vst.msk [vmem:[#allocation2 + $0x88] sm:$0x3] %vm190, 0.0
          %207 = vst.msk [vmem:[#allocation2 + $0x90] sm:$0xff] %vm187, 0.0
          %208 = vst.msk [vmem:[#allocation2 + $0x98] sm:$0xff] %vm187, 0.0
          %209 = vst.msk [vmem:[#allocation2 + $0xa0] sm:$0x3] %vm190, 0.0
          %210 = vst.msk [vmem:[#allocation2 + $0xa8] sm:$0xff] %vm187, 0.0
          %211 = vst.msk [vmem:[#allocation2 + $0xb0] sm:$0xff] %vm187, 0.0
          %212 = vst.msk [vmem:[#allocation2 + $0xb8] sm:$0x3] %vm190, 0.0
          %213 = vst.msk [vmem:[#allocation2 + $0xc0] sm:$0xff] %vm187, 0.0
          %214 = vst.msk [vmem:[#allocation2 + $0xc8] sm:$0xff] %vm187, 0.0
          %215 = vst.msk [vmem:[#allocation2 + $0xd0] sm:$0x3] %vm190, 0.0
          %216 = vst.msk [vmem:[#allocation2 + $0xd8] sm:$0xff] %vm187, 0.0
          %217 = vst.msk [vmem:[#allocation2 + $0xe0] sm:$0xff] %vm187, 0.0
          %218 = vst.msk [vmem:[#allocation2 + $0xe8] sm:$0x3] %vm190, 0.0
          %219 = vst.msk [vmem:[#allocation2 + $0xf0] sm:$0xff] %vm187, 0.0
          %220 = vst.msk [vmem:[#allocation2 + $0xf8] sm:$0xff] %vm187, 0.0
          %221 = vst.msk [vmem:[#allocation2 + $0x100] sm:$0x3] %vm190, 0.0
          %222 = vst.msk [vmem:[#allocation2 + $0x108] sm:$0xff] %vm187, 0.0
          %223 = vst.msk [vmem:[#allocation2 + $0x110] sm:$0xff] %vm187, 0.0
          %224 = vst.msk [vmem:[#allocation2 + $0x118] sm:$0x3] %vm190, 0.0
          %225 = vst.msk [vmem:[#allocation2 + $0x120] sm:$0xff] %vm187, 0.0
          %226 = vst.msk [vmem:[#allocation2 + $0x128] sm:$0xff] %vm187, 0.0
          %227 = vst.msk [vmem:[#allocation2 + $0x130] sm:$0x3] %vm190, 0.0
          %228 = vst.msk [vmem:[#allocation2 + $0x138] sm:$0xff] %vm187, 0.0
          %229 = vst.msk [vmem:[#allocation2 + $0x140] sm:$0xff] %vm187, 0.0
          %230 = vst.msk [vmem:[#allocation2 + $0x148] sm:$0x3] %vm190, 0.0
          %231 = vst.msk [vmem:[#allocation2 + $0x150] sm:$0xff] %vm187, 0.0
          %232 = vst.msk [vmem:[#allocation2 + $0x158] sm:$0xff] %vm187, 0.0
          %233 = vst.msk [vmem:[#allocation2 + $0x160] sm:$0x3] %vm190, 0.0
          %234 = vst.msk [vmem:[#allocation2 + $0x168] sm:$0xff] %vm187, 0.0
          %235 = vst.msk [vmem:[#allocation2 + $0x170] sm:$0xff] %vm187, 0.0
          %236 = vst.msk [vmem:[#allocation2 + $0x178] sm:$0x3] %vm190, 0.0
          %237 = vst.msk [vmem:[#allocation2 + $0x180] sm:$0xff] %vm187, 0.0
          %238 = vst.msk [vmem:[#allocation2 + $0x188] sm:$0xff] %vm187, 0.0
          %239 = vst.msk [vmem:[#allocation2 + $0x190] sm:$0x3] %vm190, 0.0
          %240 = vst.msk [vmem:[#allocation2 + $0x198] sm:$0xff] %vm187, 0.0
          %241 = vst.msk [vmem:[#allocation2 + $0x1a0] sm:$0xff] %vm187, 0.0
          %242 = vst.msk [vmem:[#allocation2 + $0x1a8] sm:$0x3] %vm190, 0.0
          %v243 = vld [vmem:[%s182] sm:$0xff]
          %v244 = vld [vmem:[%s182 + $0x8] sm:$0xff]
          %v245 = vld [vmem:[%s182 + $0x10] sm:$0xff]
          %v246 = vld [vmem:[%s182 + $0x18] sm:$0xff]
          %v247 = vld [vmem:[%s182 + $0x20] sm:$0xff]
          %v248 = vld [vmem:[%s182 + $0x28] sm:$0xff]
          %v249 = vld [vmem:[%s182 + $0x30] sm:$0xff]
          %v250 = vld [vmem:[%s182 + $0x38] sm:$0xff]
          %v251 = vld [vmem:[%s182 + $0x40] sm:$0xff]
          %v252 = vld [vmem:[%s182 + $0x48] sm:$0xff]
          %v253 = vld [vmem:[%s182 + $0x50] sm:$0xff]
          %v254 = vld [vmem:[%s182 + $0x58] sm:$0xff]
          %v255 = vld [vmem:[%s182 + $0x60] sm:$0xff]
          %v256 = vld [vmem:[%s182 + $0x68] sm:$0xff]
          %v257 = vld [vmem:[%s182 + $0x70] sm:$0xff]
          %v258 = vld [vmem:[%s182 + $0x78] sm:$0xff]
          %v259 = vld [vmem:[%s182 + $0x80] sm:$0xff]
          %v260 = vld [vmem:[%s182 + $0x88] sm:$0xff]
          %v261 = vld [vmem:[%s182 + $0x90] sm:$0xff]
          %v262 = vld [vmem:[%s182 + $0x98] sm:$0xff]
          %v263 = vld [vmem:[%s182 + $0xa0] sm:$0xff]
          %v264 = vld [vmem:[%s182 + $0xa8] sm:$0xff]
          %v265 = vld [vmem:[%s182 + $0xb0] sm:$0xff]
          %v266 = vld [vmem:[%s182 + $0xb8] sm:$0xff]
          %v267 = vld [vmem:[%s182 + $0xc0] sm:$0xff]
          %v268 = vld [vmem:[%s182 + $0xc8] sm:$0xff]
          %v269 = vld [vmem:[%s182 + $0xd0] sm:$0xff]
          %v270 = vld [vmem:[%s182 + $0xd8] sm:$0xff]
          %v271 = vld [vmem:[%s182 + $0xe0] sm:$0xff]
          %v272 = vld [vmem:[%s182 + $0xe8] sm:$0xff]
          %v273 = vld [vmem:[%s182 + $0xf0] sm:$0xff]
          %v274 = vld [vmem:[%s182 + $0xf8] sm:$0xff]
          %s275 = scalar_lea.vmem [#allocation2], 24
          %276 = vst.msk [vmem:[%s275 + $0x1] sm:$0xff] %vm187, %v243
          %277 = vst.msk [vmem:[%s275 + $0x9] sm:$0xff] %vm187, %v244
          %278 = vst.msk [vmem:[%s275 + $0x19] sm:$0xff] %vm187, %v245
          %279 = vst.msk [vmem:[%s275 + $0x21] sm:$0xff] %vm187, %v246
          %280 = vst.msk [vmem:[%s275 + $0x31] sm:$0xff] %vm187, %v247
          %281 = vst.msk [vmem:[%s275 + $0x39] sm:$0xff] %vm187, %v248
          %282 = vst.msk [vmem:[%s275 + $0x49] sm:$0xff] %vm187, %v249
          %283 = vst.msk [vmem:[%s275 + $0x51] sm:$0xff] %vm187, %v250
          %284 = vst.msk [vmem:[%s275 + $0x61] sm:$0xff] %vm187, %v251
          %285 = vst.msk [vmem:[%s275 + $0x69] sm:$0xff] %vm187, %v252
          %286 = vst.msk [vmem:[%s275 + $0x79] sm:$0xff] %vm187, %v253
          %287 = vst.msk [vmem:[%s275 + $0x81] sm:$0xff] %vm187, %v254
          %288 = vst.msk [vmem:[%s275 + $0x91] sm:$0xff] %vm187, %v255
          %289 = vst.msk [vmem:[%s275 + $0x99] sm:$0xff] %vm187, %v256
          %290 = vst.msk [vmem:[%s275 + $0xa9] sm:$0xff] %vm187, %v257
          %291 = vst.msk [vmem:[%s275 + $0xb1] sm:$0xff] %vm187, %v258
          %292 = vst.msk [vmem:[%s275 + $0xc1] sm:$0xff] %vm187, %v259
          %293 = vst.msk [vmem:[%s275 + $0xc9] sm:$0xff] %vm187, %v260
          %294 = vst.msk [vmem:[%s275 + $0xd9] sm:$0xff] %vm187, %v261
          %295 = vst.msk [vmem:[%s275 + $0xe1] sm:$0xff] %vm187, %v262
          %296 = vst.msk [vmem:[%s275 + $0xf1] sm:$0xff] %vm187, %v263
          %297 = vst.msk [vmem:[%s275 + $0xf9] sm:$0xff] %vm187, %v264
          %298 = vst.msk [vmem:[%s275 + $0x109] sm:$0xff] %vm187, %v265
          %299 = vst.msk [vmem:[%s275 + $0x111] sm:$0xff] %vm187, %v266
          %300 = vst.msk [vmem:[%s275 + $0x121] sm:$0xff] %vm187, %v267
          %301 = vst.msk [vmem:[%s275 + $0x129] sm:$0xff] %vm187, %v268
          %302 = vst.msk [vmem:[%s275 + $0x139] sm:$0xff] %vm187, %v269
          %303 = vst.msk [vmem:[%s275 + $0x141] sm:$0xff] %vm187, %v270
          %304 = vst.msk [vmem:[%s275 + $0x151] sm:$0xff] %vm187, %v271
          %305 = vst.msk [vmem:[%s275 + $0x159] sm:$0xff] %vm187, %v272
          %306 = vst.msk [vmem:[%s275 + $0x169] sm:$0xff] %vm187, %v273
          %307 = vst.msk [vmem:[%s275 + $0x171] sm:$0xff] %vm187, %v274
        $region36: #{tpu_custom_call.1} parent=31 // pred_fallthru
          _
        %v308 = vld [vmem:[%s1] sm:$0x7]
        %v309 = vld [vmem:[%s1 + $0x4] sm:$0x7]
        %v310 = vld [vmem:[%s1 + $0x8] sm:$0x7]
        %s311 = smul.u32 %s22, 8
        %s312 = smul.u32 %s311, 24
        %s313 = scalar_lea.vmem [#allocation2], %s312
        %v314 = vld [vmem:[%s313] sm:$0xff]
        %v315 = vld [vmem:[%s313 + $0x8] sm:$0xff]
        %v316 = vld [vmem:[%s313 + $0x18] sm:$0xff]
        %v317 = vld [vmem:[%s313 + $0x20] sm:$0xff]
        %v318 = vld [vmem:[%s313 + $0x30] sm:$0xff]
        %v319 = vld [vmem:[%s313 + $0x38] sm:$0xff]
        %v320 = vld [vmem:[%s313 + $0x48] sm:$0xff]
        %v321 = vld [vmem:[%s313 + $0x50] sm:$0xff]
        %v322 = vld [vmem:[%s313 + $0x60] sm:$0xff]
        %v323 = vld [vmem:[%s313 + $0x68] sm:$0xff]
        %v324 = vld [vmem:[%s313 + $0x78] sm:$0xff]
        %v325 = vld [vmem:[%s313 + $0x80] sm:$0xff]
        %v326 = vld [vmem:[%s313 + $0x90] sm:$0xff]
        %v327 = vld [vmem:[%s313 + $0x98] sm:$0xff]
        %v328 = vld [vmem:[%s313 + $0xa8] sm:$0xff]
        %v329 = vld [vmem:[%s313 + $0xb0] sm:$0xff]
        %v330 = vlaneseq
        %v331 = vshrl.u32 %v330, 7
        %v332 = vsub.s32 0, %v331
        %v333 = vrot.slane %v308, %v332
        %v334 = vmul.f32 %v314, %v333
        %v335 = vmul.f32 %v315, %v333
        %v336 = vmul.f32 %v316, %v333
        %v337 = vmul.f32 %v317, %v333
        %v338 = vmul.f32 %v318, %v333
        %v339 = vmul.f32 %v319, %v333
        %v340 = vmul.f32 %v320, %v333
        %v341 = vmul.f32 %v321, %v333
        %v342 = vmul.f32 %v322, %v333
        %v343 = vmul.f32 %v323, %v333
        %v344 = vmul.f32 %v324, %v333
        %v345 = vmul.f32 %v325, %v333
        %v346 = vmul.f32 %v326, %v333
        %v347 = vmul.f32 %v327, %v333
        %v348 = vmul.f32 %v328, %v333
        %v349 = vmul.f32 %v329, %v333
        %v350 = vadd.f32 %v334, 0.0
        %v351 = vadd.f32 %v335, 0.0
        %v352 = vadd.f32 %v336, 0.0
        %v353 = vadd.f32 %v337, 0.0
        %v354 = vadd.f32 %v338, 0.0
        %v355 = vadd.f32 %v339, 0.0
        %v356 = vadd.f32 %v340, 0.0
        %v357 = vadd.f32 %v341, 0.0
        %v358 = vadd.f32 %v342, 0.0
        %v359 = vadd.f32 %v343, 0.0
        %v360 = vadd.f32 %v344, 0.0
        %v361 = vadd.f32 %v345, 0.0
        %v362 = vadd.f32 %v346, 0.0
        %v363 = vadd.f32 %v347, 0.0
        %v364 = vadd.f32 %v348, 0.0
        %v365 = vadd.f32 %v349, 0.0
        %v366 = vld [vmem:[%s313 + $0x1] sm:$0xff]
        %v367 = vld [vmem:[%s313 + $0x9] sm:$0xff]
        %v368 = vld [vmem:[%s313 + $0x19] sm:$0xff]
        %v369 = vld [vmem:[%s313 + $0x21] sm:$0xff]
        %v370 = vld [vmem:[%s313 + $0x31] sm:$0xff]
        %v371 = vld [vmem:[%s313 + $0x39] sm:$0xff]
        %v372 = vld [vmem:[%s313 + $0x49] sm:$0xff]
        %v373 = vld [vmem:[%s313 + $0x51] sm:$0xff]
        %v374 = vld [vmem:[%s313 + $0x61] sm:$0xff]
        %v375 = vld [vmem:[%s313 + $0x69] sm:$0xff]
        %v376 = vld [vmem:[%s313 + $0x79] sm:$0xff]
        %v377 = vld [vmem:[%s313 + $0x81] sm:$0xff]
        %v378 = vld [vmem:[%s313 + $0x91] sm:$0xff]
        %v379 = vld [vmem:[%s313 + $0x99] sm:$0xff]
        %v380 = vld [vmem:[%s313 + $0xa9] sm:$0xff]
        %v381 = vld [vmem:[%s313 + $0xb1] sm:$0xff]
        %v382 = vlaneseq
        %v383 = vshrl.u32 %v382, 7
        %v384 = vsub.s32 1, %v383
        %v385 = vrot.slane %v308, %v384
        %v386 = vmul.f32 %v366, %v385
        %v387 = vmul.f32 %v367, %v385
        %v388 = vmul.f32 %v368, %v385
        %v389 = vmul.f32 %v369, %v385
        %v390 = vmul.f32 %v370, %v385
        %v391 = vmul.f32 %v371, %v385
        %v392 = vmul.f32 %v372, %v385
        %v393 = vmul.f32 %v373, %v385
        %v394 = vmul.f32 %v374, %v385
        %v395 = vmul.f32 %v375, %v385
        %v396 = vmul.f32 %v376, %v385
        %v397 = vmul.f32 %v377, %v385
        %v398 = vmul.f32 %v378, %v385
        %v399 = vmul.f32 %v379, %v385
        %v400 = vmul.f32 %v380, %v385
        %v401 = vmul.f32 %v381, %v385
        %v402 = vadd.f32 %v350, %v386
        %v403 = vadd.f32 %v351, %v387
        %v404 = vadd.f32 %v352, %v388
        %v405 = vadd.f32 %v353, %v389
        %v406 = vadd.f32 %v354, %v390
        %v407 = vadd.f32 %v355, %v391
        %v408 = vadd.f32 %v356, %v392
        %v409 = vadd.f32 %v357, %v393
        %v410 = vadd.f32 %v358, %v394
        %v411 = vadd.f32 %v359, %v395
        %v412 = vadd.f32 %v360, %v396
        %v413 = vadd.f32 %v361, %v397
        %v414 = vadd.f32 %v362, %v398
        %v415 = vadd.f32 %v363, %v399
        %v416 = vadd.f32 %v364, %v400
        %v417 = vadd.f32 %v365, %v401
        %v418 = vld [vmem:[%s313 + $0x2] sm:$0xff]
        %v419 = vld [vmem:[%s313 + $0xa] sm:$0xff]
        %v420 = vld [vmem:[%s313 + $0x1a] sm:$0xff]
        %v421 = vld [vmem:[%s313 + $0x22] sm:$0xff]
        %v422 = vld [vmem:[%s313 + $0x32] sm:$0xff]
        %v423 = vld [vmem:[%s313 + $0x3a] sm:$0xff]
        %v424 = vld [vmem:[%s313 + $0x4a] sm:$0xff]
        %v425 = vld [vmem:[%s313 + $0x52] sm:$0xff]
        %v426 = vld [vmem:[%s313 + $0x62] sm:$0xff]
        %v427 = vld [vmem:[%s313 + $0x6a] sm:$0xff]
        %v428 = vld [vmem:[%s313 + $0x7a] sm:$0xff]
        %v429 = vld [vmem:[%s313 + $0x82] sm:$0xff]
        %v430 = vld [vmem:[%s313 + $0x92] sm:$0xff]
        %v431 = vld [vmem:[%s313 + $0x9a] sm:$0xff]
        %v432 = vld [vmem:[%s313 + $0xaa] sm:$0xff]
        %v433 = vld [vmem:[%s313 + $0xb2] sm:$0xff]
        %v434 = vlaneseq
        %v435 = vshrl.u32 %v434, 7
        %v436 = vsub.s32 2, %v435
        %v437 = vrot.slane %v308, %v436
        %v438 = vmul.f32 %v418, %v437
        %v439 = vmul.f32 %v419, %v437
        %v440 = vmul.f32 %v420, %v437
        %v441 = vmul.f32 %v421, %v437
        %v442 = vmul.f32 %v422, %v437
        %v443 = vmul.f32 %v423, %v437
        %v444 = vmul.f32 %v424, %v437
        %v445 = vmul.f32 %v425, %v437
        %v446 = vmul.f32 %v426, %v437
        %v447 = vmul.f32 %v427, %v437
        %v448 = vmul.f32 %v428, %v437
        %v449 = vmul.f32 %v429, %v437
        %v450 = vmul.f32 %v430, %v437
        %v451 = vmul.f32 %v431, %v437
        %v452 = vmul.f32 %v432, %v437
        %v453 = vmul.f32 %v433, %v437
        %v454 = vadd.f32 %v402, %v438
        %v455 = vadd.f32 %v403, %v439
        %v456 = vadd.f32 %v404, %v440
        %v457 = vadd.f32 %v405, %v441
        %v458 = vadd.f32 %v406, %v442
        %v459 = vadd.f32 %v407, %v443
        %v460 = vadd.f32 %v408, %v444
        %v461 = vadd.f32 %v409, %v445
        %v462 = vadd.f32 %v410, %v446
        %v463 = vadd.f32 %v411, %v447
        %v464 = vadd.f32 %v412, %v448
        %v465 = vadd.f32 %v413, %v449
        %v466 = vadd.f32 %v414, %v450
        %v467 = vadd.f32 %v415, %v451
        %v468 = vadd.f32 %v416, %v452
        %v469 = vadd.f32 %v417, %v453
        %s470 = sadd.s32 %s311, 1
        %s471 = smul.u32 %s470, 24
        %s472 = scalar_lea.vmem [#allocation2], %s471
        %v473 = vld [vmem:[%s472] sm:$0xff]
        %v474 = vld [vmem:[%s472 + $0x8] sm:$0xff]
        %v475 = vld [vmem:[%s472 + $0x18] sm:$0xff]
        %v476 = vld [vmem:[%s472 + $0x20] sm:$0xff]
        %v477 = vld [vmem:[%s472 + $0x30] sm:$0xff]
        %v478 = vld [vmem:[%s472 + $0x38] sm:$0xff]
        %v479 = vld [vmem:[%s472 + $0x48] sm:$0xff]
        %v480 = vld [vmem:[%s472 + $0x50] sm:$0xff]
        %v481 = vld [vmem:[%s472 + $0x60] sm:$0xff]
        %v482 = vld [vmem:[%s472 + $0x68] sm:$0xff]
        %v483 = vld [vmem:[%s472 + $0x78] sm:$0xff]
        %v484 = vld [vmem:[%s472 + $0x80] sm:$0xff]
        %v485 = vld [vmem:[%s472 + $0x90] sm:$0xff]
        %v486 = vld [vmem:[%s472 + $0x98] sm:$0xff]
        %v487 = vld [vmem:[%s472 + $0xa8] sm:$0xff]
        %v488 = vld [vmem:[%s472 + $0xb0] sm:$0xff]
        %v489 = vlaneseq
        %v490 = vshrl.u32 %v489, 7
        %v491 = vsub.s32 0, %v490
        %v492 = vrot.slane %v309, %v491
        %v493 = vmul.f32 %v473, %v492
        %v494 = vmul.f32 %v474, %v492
        %v495 = vmul.f32 %v475, %v492
        %v496 = vmul.f32 %v476, %v492
        %v497 = vmul.f32 %v477, %v492
        %v498 = vmul.f32 %v478, %v492
        %v499 = vmul.f32 %v479, %v492
        %v500 = vmul.f32 %v480, %v492
        %v501 = vmul.f32 %v481, %v492
        %v502 = vmul.f32 %v482, %v492
        %v503 = vmul.f32 %v483, %v492
        %v504 = vmul.f32 %v484, %v492
        %v505 = vmul.f32 %v485, %v492
        %v506 = vmul.f32 %v486, %v492
        %v507 = vmul.f32 %v487, %v492
        %v508 = vmul.f32 %v488, %v492
        %v509 = vadd.f32 %v454, %v493
        %v510 = vadd.f32 %v455, %v494
        %v511 = vadd.f32 %v456, %v495
        %v512 = vadd.f32 %v457, %v496
        %v513 = vadd.f32 %v458, %v497
        %v514 = vadd.f32 %v459, %v498
        %v515 = vadd.f32 %v460, %v499
        %v516 = vadd.f32 %v461, %v500
        %v517 = vadd.f32 %v462, %v501
        %v518 = vadd.f32 %v463, %v502
        %v519 = vadd.f32 %v464, %v503
        %v520 = vadd.f32 %v465, %v504
        %v521 = vadd.f32 %v466, %v505
        %v522 = vadd.f32 %v467, %v506
        %v523 = vadd.f32 %v468, %v507
        %v524 = vadd.f32 %v469, %v508
        %v525 = vld [vmem:[%s472 + $0x1] sm:$0xff]
        %v526 = vld [vmem:[%s472 + $0x9] sm:$0xff]
        %v527 = vld [vmem:[%s472 + $0x19] sm:$0xff]
        %v528 = vld [vmem:[%s472 + $0x21] sm:$0xff]
        %v529 = vld [vmem:[%s472 + $0x31] sm:$0xff]
        %v530 = vld [vmem:[%s472 + $0x39] sm:$0xff]
        %v531 = vld [vmem:[%s472 + $0x49] sm:$0xff]
        %v532 = vld [vmem:[%s472 + $0x51] sm:$0xff]
        %v533 = vld [vmem:[%s472 + $0x61] sm:$0xff]
        %v534 = vld [vmem:[%s472 + $0x69] sm:$0xff]
        %v535 = vld [vmem:[%s472 + $0x79] sm:$0xff]
        %v536 = vld [vmem:[%s472 + $0x81] sm:$0xff]
        %v537 = vld [vmem:[%s472 + $0x91] sm:$0xff]
        %v538 = vld [vmem:[%s472 + $0x99] sm:$0xff]
        %v539 = vld [vmem:[%s472 + $0xa9] sm:$0xff]
        %v540 = vld [vmem:[%s472 + $0xb1] sm:$0xff]
        %v541 = vlaneseq
        %v542 = vshrl.u32 %v541, 7
        %v543 = vsub.s32 1, %v542
        %v544 = vrot.slane %v309, %v543
        %v545 = vmul.f32 %v525, %v544
        %v546 = vmul.f32 %v526, %v544
        %v547 = vmul.f32 %v527, %v544
        %v548 = vmul.f32 %v528, %v544
        %v549 = vmul.f32 %v529, %v544
        %v550 = vmul.f32 %v530, %v544
        %v551 = vmul.f32 %v531, %v544
        %v552 = vmul.f32 %v532, %v544
        %v553 = vmul.f32 %v533, %v544
        %v554 = vmul.f32 %v534, %v544
        %v555 = vmul.f32 %v535, %v544
        %v556 = vmul.f32 %v536, %v544
        %v557 = vmul.f32 %v537, %v544
        %v558 = vmul.f32 %v538, %v544
        %v559 = vmul.f32 %v539, %v544
        %v560 = vmul.f32 %v540, %v544
        %v561 = vadd.f32 %v509, %v545
        %v562 = vadd.f32 %v510, %v546
        %v563 = vadd.f32 %v511, %v547
        %v564 = vadd.f32 %v512, %v548
        %v565 = vadd.f32 %v513, %v549
        %v566 = vadd.f32 %v514, %v550
        %v567 = vadd.f32 %v515, %v551
        %v568 = vadd.f32 %v516, %v552
        %v569 = vadd.f32 %v517, %v553
        %v570 = vadd.f32 %v518, %v554
        %v571 = vadd.f32 %v519, %v555
        %v572 = vadd.f32 %v520, %v556
        %v573 = vadd.f32 %v521, %v557
        %v574 = vadd.f32 %v522, %v558
        %v575 = vadd.f32 %v523, %v559
        %v576 = vadd.f32 %v524, %v560
        %v577 = vld [vmem:[%s472 + $0x2] sm:$0xff]
        %v578 = vld [vmem:[%s472 + $0xa] sm:$0xff]
        %v579 = vld [vmem:[%s472 + $0x1a] sm:$0xff]
        %v580 = vld [vmem:[%s472 + $0x22] sm:$0xff]
        %v581 = vld [vmem:[%s472 + $0x32] sm:$0xff]
        %v582 = vld [vmem:[%s472 + $0x3a] sm:$0xff]
        %v583 = vld [vmem:[%s472 + $0x4a] sm:$0xff]
        %v584 = vld [vmem:[%s472 + $0x52] sm:$0xff]
        %v585 = vld [vmem:[%s472 + $0x62] sm:$0xff]
        %v586 = vld [vmem:[%s472 + $0x6a] sm:$0xff]
        %v587 = vld [vmem:[%s472 + $0x7a] sm:$0xff]
        %v588 = vld [vmem:[%s472 + $0x82] sm:$0xff]
        %v589 = vld [vmem:[%s472 + $0x92] sm:$0xff]
        %v590 = vld [vmem:[%s472 + $0x9a] sm:$0xff]
        %v591 = vld [vmem:[%s472 + $0xaa] sm:$0xff]
        %v592 = vld [vmem:[%s472 + $0xb2] sm:$0xff]
        %v593 = vlaneseq
        %v594 = vshrl.u32 %v593, 7
        %v595 = vsub.s32 2, %v594
        %v596 = vrot.slane %v309, %v595
        %v597 = vmul.f32 %v577, %v596
        %v598 = vmul.f32 %v578, %v596
        %v599 = vmul.f32 %v579, %v596
        %v600 = vmul.f32 %v580, %v596
        %v601 = vmul.f32 %v581, %v596
        %v602 = vmul.f32 %v582, %v596
        %v603 = vmul.f32 %v583, %v596
        %v604 = vmul.f32 %v584, %v596
        %v605 = vmul.f32 %v585, %v596
        %v606 = vmul.f32 %v586, %v596
        %v607 = vmul.f32 %v587, %v596
        %v608 = vmul.f32 %v588, %v596
        %v609 = vmul.f32 %v589, %v596
        %v610 = vmul.f32 %v590, %v596
        %v611 = vmul.f32 %v591, %v596
        %v612 = vmul.f32 %v592, %v596
        %v613 = vadd.f32 %v561, %v597
        %v614 = vadd.f32 %v562, %v598
        %v615 = vadd.f32 %v563, %v599
        %v616 = vadd.f32 %v564, %v600
        %v617 = vadd.f32 %v565, %v601
        %v618 = vadd.f32 %v566, %v602
        %v619 = vadd.f32 %v567, %v603
        %v620 = vadd.f32 %v568, %v604
        %v621 = vadd.f32 %v569, %v605
        %v622 = vadd.f32 %v570, %v606
        %v623 = vadd.f32 %v571, %v607
        %v624 = vadd.f32 %v572, %v608
        %v625 = vadd.f32 %v573, %v609
        %v626 = vadd.f32 %v574, %v610
        %v627 = vadd.f32 %v575, %v611
        %v628 = vadd.f32 %v576, %v612
        %s629 = sadd.s32 %s311, 2
        %s630 = smul.u32 %s629, 24
        %s631 = scalar_lea.vmem [#allocation2], %s630
        %v632 = vld [vmem:[%s631] sm:$0xff]
        %v633 = vld [vmem:[%s631 + $0x8] sm:$0xff]
        %v634 = vld [vmem:[%s631 + $0x18] sm:$0xff]
        %v635 = vld [vmem:[%s631 + $0x20] sm:$0xff]
        %v636 = vld [vmem:[%s631 + $0x30] sm:$0xff]
        %v637 = vld [vmem:[%s631 + $0x38] sm:$0xff]
        %v638 = vld [vmem:[%s631 + $0x48] sm:$0xff]
        %v639 = vld [vmem:[%s631 + $0x50] sm:$0xff]
        %v640 = vld [vmem:[%s631 + $0x60] sm:$0xff]
        %v641 = vld [vmem:[%s631 + $0x68] sm:$0xff]
        %v642 = vld [vmem:[%s631 + $0x78] sm:$0xff]
        %v643 = vld [vmem:[%s631 + $0x80] sm:$0xff]
        %v644 = vld [vmem:[%s631 + $0x90] sm:$0xff]
        %v645 = vld [vmem:[%s631 + $0x98] sm:$0xff]
        %v646 = vld [vmem:[%s631 + $0xa8] sm:$0xff]
        %v647 = vld [vmem:[%s631 + $0xb0] sm:$0xff]
        %v648 = vlaneseq
        %v649 = vshrl.u32 %v648, 7
        %v650 = vsub.s32 0, %v649
        %v651 = vrot.slane %v310, %v650
        %v652 = vmul.f32 %v632, %v651
        %v653 = vmul.f32 %v633, %v651
        %v654 = vmul.f32 %v634, %v651
        %v655 = vmul.f32 %v635, %v651
        %v656 = vmul.f32 %v636, %v651
        %v657 = vmul.f32 %v637, %v651
        %v658 = vmul.f32 %v638, %v651
        %v659 = vmul.f32 %v639, %v651
        %v660 = vmul.f32 %v640, %v651
        %v661 = vmul.f32 %v641, %v651
        %v662 = vmul.f32 %v642, %v651
        %v663 = vmul.f32 %v643, %v651
        %v664 = vmul.f32 %v644, %v651
        %v665 = vmul.f32 %v645, %v651
        %v666 = vmul.f32 %v646, %v651
        %v667 = vmul.f32 %v647, %v651
        %v668 = vadd.f32 %v613, %v652
        %v669 = vadd.f32 %v614, %v653
        %v670 = vadd.f32 %v615, %v654
        %v671 = vadd.f32 %v616, %v655
        %v672 = vadd.f32 %v617, %v656
        %v673 = vadd.f32 %v618, %v657
        %v674 = vadd.f32 %v619, %v658
        %v675 = vadd.f32 %v620, %v659
        %v676 = vadd.f32 %v621, %v660
        %v677 = vadd.f32 %v622, %v661
        %v678 = vadd.f32 %v623, %v662
        %v679 = vadd.f32 %v624, %v663
        %v680 = vadd.f32 %v625, %v664
        %v681 = vadd.f32 %v626, %v665
        %v682 = vadd.f32 %v627, %v666
        %v683 = vadd.f32 %v628, %v667
        %v684 = vld [vmem:[%s631 + $0x1] sm:$0xff]
        %v685 = vld [vmem:[%s631 + $0x9] sm:$0xff]
        %v686 = vld [vmem:[%s631 + $0x19] sm:$0xff]
        %v687 = vld [vmem:[%s631 + $0x21] sm:$0xff]
        %v688 = vld [vmem:[%s631 + $0x31] sm:$0xff]
        %v689 = vld [vmem:[%s631 + $0x39] sm:$0xff]
        %v690 = vld [vmem:[%s631 + $0x49] sm:$0xff]
        %v691 = vld [vmem:[%s631 + $0x51] sm:$0xff]
        %v692 = vld [vmem:[%s631 + $0x61] sm:$0xff]
        %v693 = vld [vmem:[%s631 + $0x69] sm:$0xff]
        %v694 = vld [vmem:[%s631 + $0x79] sm:$0xff]
        %v695 = vld [vmem:[%s631 + $0x81] sm:$0xff]
        %v696 = vld [vmem:[%s631 + $0x91] sm:$0xff]
        %v697 = vld [vmem:[%s631 + $0x99] sm:$0xff]
        %v698 = vld [vmem:[%s631 + $0xa9] sm:$0xff]
        %v699 = vld [vmem:[%s631 + $0xb1] sm:$0xff]
        %v700 = vlaneseq
        %v701 = vshrl.u32 %v700, 7
        %v702 = vsub.s32 1, %v701
        %v703 = vrot.slane %v310, %v702
        %v704 = vmul.f32 %v684, %v703
        %v705 = vmul.f32 %v685, %v703
        %v706 = vmul.f32 %v686, %v703
        %v707 = vmul.f32 %v687, %v703
        %v708 = vmul.f32 %v688, %v703
        %v709 = vmul.f32 %v689, %v703
        %v710 = vmul.f32 %v690, %v703
        %v711 = vmul.f32 %v691, %v703
        %v712 = vmul.f32 %v692, %v703
        %v713 = vmul.f32 %v693, %v703
        %v714 = vmul.f32 %v694, %v703
        %v715 = vmul.f32 %v695, %v703
        %v716 = vmul.f32 %v696, %v703
        %v717 = vmul.f32 %v697, %v703
        %v718 = vmul.f32 %v698, %v703
        %v719 = vmul.f32 %v699, %v703
        %v720 = vadd.f32 %v668, %v704
        %v721 = vadd.f32 %v669, %v705
        %v722 = vadd.f32 %v670, %v706
        %v723 = vadd.f32 %v671, %v707
        %v724 = vadd.f32 %v672, %v708
        %v725 = vadd.f32 %v673, %v709
        %v726 = vadd.f32 %v674, %v710
        %v727 = vadd.f32 %v675, %v711
        %v728 = vadd.f32 %v676, %v712
        %v729 = vadd.f32 %v677, %v713
        %v730 = vadd.f32 %v678, %v714
        %v731 = vadd.f32 %v679, %v715
        %v732 = vadd.f32 %v680, %v716
        %v733 = vadd.f32 %v681, %v717
        %v734 = vadd.f32 %v682, %v718
        %v735 = vadd.f32 %v683, %v719
        %v736 = vld [vmem:[%s631 + $0x2] sm:$0xff]
        %v737 = vld [vmem:[%s631 + $0xa] sm:$0xff]
        %v738 = vld [vmem:[%s631 + $0x1a] sm:$0xff]
        %v739 = vld [vmem:[%s631 + $0x22] sm:$0xff]
        %v740 = vld [vmem:[%s631 + $0x32] sm:$0xff]
        %v741 = vld [vmem:[%s631 + $0x3a] sm:$0xff]
        %v742 = vld [vmem:[%s631 + $0x4a] sm:$0xff]
        %v743 = vld [vmem:[%s631 + $0x52] sm:$0xff]
        %v744 = vld [vmem:[%s631 + $0x62] sm:$0xff]
        %v745 = vld [vmem:[%s631 + $0x6a] sm:$0xff]
        %v746 = vld [vmem:[%s631 + $0x7a] sm:$0xff]
        %v747 = vld [vmem:[%s631 + $0x82] sm:$0xff]
        %v748 = vld [vmem:[%s631 + $0x92] sm:$0xff]
        %v749 = vld [vmem:[%s631 + $0x9a] sm:$0xff]
        %v750 = vld [vmem:[%s631 + $0xaa] sm:$0xff]
        %v751 = vld [vmem:[%s631 + $0xb2] sm:$0xff]
        %v752 = vlaneseq
        %v753 = vshrl.u32 %v752, 7
        %v754 = vsub.s32 2, %v753
        %v755 = vrot.slane %v310, %v754
        %v756 = vmul.f32 %v736, %v755
        %v757 = vmul.f32 %v737, %v755
        %v758 = vmul.f32 %v738, %v755
        %v759 = vmul.f32 %v739, %v755
        %v760 = vmul.f32 %v740, %v755
        %v761 = vmul.f32 %v741, %v755
        %v762 = vmul.f32 %v742, %v755
        %v763 = vmul.f32 %v743, %v755
        %v764 = vmul.f32 %v744, %v755
        %v765 = vmul.f32 %v745, %v755
        %v766 = vmul.f32 %v746, %v755
        %v767 = vmul.f32 %v747, %v755
        %v768 = vmul.f32 %v748, %v755
        %v769 = vmul.f32 %v749, %v755
        %v770 = vmul.f32 %v750, %v755
        %v771 = vmul.f32 %v751, %v755
        %v772 = vadd.f32 %v720, %v756
        %v773 = vadd.f32 %v721, %v757
        %v774 = vadd.f32 %v722, %v758
        %v775 = vadd.f32 %v723, %v759
        %v776 = vadd.f32 %v724, %v760
        %v777 = vadd.f32 %v725, %v761
        %v778 = vadd.f32 %v726, %v762
        %v779 = vadd.f32 %v727, %v763
        %v780 = vadd.f32 %v728, %v764
        %v781 = vadd.f32 %v729, %v765
        %v782 = vadd.f32 %v730, %v766
        %v783 = vadd.f32 %v731, %v767
        %v784 = vadd.f32 %v732, %v768
        %v785 = vadd.f32 %v733, %v769
        %v786 = vadd.f32 %v734, %v770
        %v787 = vadd.f32 %v735, %v771
        %v788 = vld [vmem:[%s2] sm:$0xff]
        %vm789 = vcmask 31744
        %v791 = vsel %vm789, %v788, 0
        %v794 = vsel %vm789, %v772, 0
        %v797 = vsel %vm789, %v773, 0
        %v800 = vsel %vm789, %v774, 0
        %v803 = vsel %vm789, %v775, 0
        %v806 = vsel %vm789, %v776, 0
        %v809 = vsel %vm789, %v777, 0
        %v812 = vsel %vm789, %v778, 0
        %v815 = vsel %vm789, %v779, 0
        %v818 = vsel %vm789, %v780, 0
        %v821 = vsel %vm789, %v781, 0
        %v824 = vsel %vm789, %v782, 0
        %v827 = vsel %vm789, %v783, 0
        %v830 = vsel %vm789, %v784, 0
        %v833 = vsel %vm789, %v785, 0
        %v836 = vsel %vm789, %v786, 0
        %v839 = vsel %vm789, %v787, 0
        %841 = vmatprep.subr.mxu0 0.0
        %842 = vmatpush1.xpose.msra.mxu0 %v794
        %843 = vmatprep.subr.mxu0 0.0
        %844 = vmatpush1.xpose.msra.mxu0 %v797
        %845 = vmatprep.subr.mxu0 0.0
        %846 = vmatpush1.xpose.msra.mxu0 %v800
        %847 = vmatprep.subr.mxu0 0.0
        %848 = vmatpush1.xpose.msra.mxu0 %v803
        %849 = vmatprep.subr.mxu0 0.0
        %850 = vmatpush1.xpose.msra.mxu0 %v806
        %851 = vmatprep.subr.mxu0 0.0
        %852 = vmatpush1.xpose.msra.mxu0 %v809
        %853 = vmatprep.subr.mxu0 0.0
        %854 = vmatpush1.xpose.msra.mxu0 %v812
        %855 = vmatprep.subr.mxu0 0.0
        %856 = vmatpush1.xpose.msra.mxu0 %v815
        %857 = vmatprep.subr.mxu0 0.0
        %858 = vmatpush1.xpose.msra.mxu0 %v818
        %859 = vmatprep.subr.mxu0 0.0
        %860 = vmatpush1.xpose.msra.mxu0 %v821
        %861 = vmatprep.subr.mxu0 0.0
        %862 = vmatpush1.xpose.msra.mxu0 %v824
        %863 = vmatprep.subr.mxu0 0.0
        %864 = vmatpush1.xpose.msra.mxu0 %v827
        %865 = vmatprep.subr.mxu0 0.0
        %866 = vmatpush1.xpose.msra.mxu0 %v830
        %867 = vmatprep.subr.mxu0 0.0
        %868 = vmatpush1.xpose.msra.mxu0 %v833
        %869 = vmatprep.subr.mxu0 0.0
        %870 = vmatpush1.xpose.msra.mxu0 %v836
        %871 = vmatprep.subr.mxu0 0.0
        %872 = vmatpush1.xpose.msra.mxu0 %v839
        %873 = vmatprep.subr.mxu0 0.0
        %874 = vmatpush1.xpose.msra.mxu0 0.0
        %875 = vmatprep.subr.mxu0 0.0
        %876 = vmatpush1.xpose.msra.mxu0 0.0
        %877 = vmatprep.subr.mxu0 0.0
        %878 = vmatpush1.xpose.msra.mxu0 0.0
        %879 = vmatprep.subr.mxu0 0.0
        %880 = vmatpush1.xpose.msra.mxu0 0.0
        %881 = vmatprep.subr.mxu0 0.0
        %882 = vmatpush1.xpose.msra.mxu0 0.0
        %883 = vmatprep.subr.mxu0 0.0
        %884 = vmatpush1.xpose.msra.mxu0 0.0
        %885 = vmatprep.subr.mxu0 0.0
        %886 = vmatpush1.xpose.msra.mxu0 0.0
        %887 = vmatprep.subr.mxu0 0.0
        %888 = vmatpush1.xpose.msra.mxu0 0.0
        %889 = vmatprep.subr.mxu0 0.0
        %890 = vmatpush1.xpose.msra.mxu0 0.0
        %891 = vmatprep.subr.mxu0 0.0
        %892 = vmatpush1.xpose.msra.mxu0 0.0
        %893 = vmatprep.subr.mxu0 0.0
        %894 = vmatpush1.xpose.msra.mxu0 0.0
        %895 = vmatprep.subr.mxu0 0.0
        %896 = vmatpush1.xpose.msra.mxu0 0.0
        %897 = vmatprep.subr.mxu0 0.0
        %898 = vmatpush1.xpose.msra.mxu0 0.0
        %899 = vmatprep.subr.mxu0 0.0
        %900 = vmatpush1.xpose.msra.mxu0 0.0
        %901 = vmatprep.subr.mxu0 0.0
        %902 = vmatpush1.xpose.msra.mxu0 0.0
        %903 = vmatprep.subr.mxu0 0.0
        %904 = vmatpush1.xpose.msra.mxu0 0.0
        %905 = vmatprep.mubr.f32.mxu0 0.0
        %906 = vmatmul.mubr.f32.gmra.mrb[0].mxu0 %v791
        %v907 = vpop.f32.mrb[0].mxu0
        %v908 = vadd.f32 0.0, %v907
        %v909 = vpop.f32.mrb[0].mxu0
        %910 = vdwg.mxu0
        %911 = vst [vmem:[%s177] sm:$0xff] %v908
        %s912 = sand.u32 %s107, 1
        %s913 = scalar_lea.sflag [#allocation4], %s912
        %s914 = sand.u32 %s107, 1
        %s915 = smul.addr %s914, 8
        %s916 = scalar_lea.vmem [#allocation3], %s915
        // Predicated region
        $region37: #{tpu_custom_call.1} parent=31 // pred_check
          %p917 = pneg %p117
        $region38: #{tpu_custom_call.1} parent=31 // pred_check_branch
          %919 = sbr.rel (%p917) target = $region40
        $region39: #{tpu_custom_call.1} parent=31 // pred_region
          %s921 = ssub.s32 128, 128
          %922 = vsyncadd %s913, %s921
          %s923 = smul.addr %s21, 2
          %s924 = sadd.s32 %s22, %s923
          %s925 = smul.addr %s924, 128
          %s926 = scalar_lea.hbm %s3, %s925
          %s928 = sshll.u32 %s916, 4
          %s929 = int_to_ptr.vmem [resolvable:$true] %s928
          %931 = dma.vmem_to_hbm [thread:$0]  %s929, 128, %s926, %s913
        $region40: #{tpu_custom_call.1} parent=31 // pred_fallthru
          _
      $region32: #{tpu_custom_call.1} parent=5 // pred_fallthru
        _
      %p932 = scmp.le.s32.totalorder 2, %s12
      // Predicated region
      $region41: #{tpu_custom_call.1} parent=5 // pred_check
        %p933 = pneg %p932
      $region42: #{tpu_custom_call.1} parent=5 // pred_check_branch
        %935 = sbr.rel (%p933) target = $region44
      $region43: #{tpu_custom_call.1} parent=5 // pred_region
        %s936 = ssub.s32 %s12, 2
        // Predicated region
        $region45: #{tpu_custom_call.1} parent=43 // pred_check
          %p937 = pneg %p123
        $region46: #{tpu_custom_call.1} parent=43 // pred_check_branch
          %939 = sbr.rel (%p937) target = $region48
        $region47: #{tpu_custom_call.1} parent=43 // pred_region
          %s940 = sand.u32 %s108, 1
          %s941 = scalar_lea.sflag [#allocation4], %s940
          %s942 = sand.u32 %s108, 1
          %s943 = smul.addr %s942, 8
          %s944 = scalar_lea.vmem [#allocation3], %s943
          %945 = dma.done %s941, 128
        $region48: #{tpu_custom_call.1} parent=43 // pred_fallthru
          _
      $region44: #{tpu_custom_call.1} parent=5 // pred_fallthru
        _
    $region6: #{tpu_custom_call.1} parent=1 // loop_footer
      %s16 = sadd.s32 1, %s12
    $region7: #{tpu_custom_call.1} parent=1 // loop_footer_branch
      %11 = sbr.rel target = $region3
    $region8: #{tpu_custom_call.1} parent=1 // loop_exit
      _
    %946 = vsyncpa [#allocation4], 1
    %s947 = scalar_lea.sflag [#allocation4], 1
    %948 = vsyncpa %s947, 1

</llo_original>
